<compile_context>
chip_gen: v6e
topology: v6e:2x2x1
jax: 0.10.0
libtpu: 0.0.40
codegen_flags: <defaults>
</compile_context>

<pallas_src>
import functools

import jax
import jax.numpy as jnp
from jax import lax
from jax.experimental import pallas as pl
from jax.experimental.pallas import tpu as pltpu


@functools.lru_cache(maxsize=None)
def _roll_is_jnp_convention() -> bool:
    """pltpu.roll matches jnp.roll (out[i] = x[i - shift]); probe once on the
    device so the depthwise tap indexing stays correct even if the rotate
    direction ever differs across Mosaic versions.  Runs under
    jax.ensure_compile_time_eval() so lazily hitting it while the wrapper is
    being traced under jax.jit is safe."""
    def probe(x_ref, o_ref):
        o_ref[...] = pltpu.roll(x_ref[...], 1, axis=1)

    with jax.ensure_compile_time_eval():
        x = jnp.tile(jnp.arange(128, dtype=jnp.float32)[None, :], (8, 1))
        y = pl.pallas_call(
            probe, out_shape=jax.ShapeDtypeStruct((8, 128), jnp.float32))(x)
        # jnp convention: jnp.roll(x, 1, axis=1)[0, 1] == x[0, 0] == 0.
        return bool(jax.device_get(y)[0, 1] == 0.0)


def _inverted_block_kernel(x_ref, w1_ref, b1_ref, w2_ref, b2_ref, w3_ref, b3_ref,
                           o_ref, *, height, width, roll_is_jnp, compute_dtype):
    # Block shapes (leading group dim squeezed by the BlockSpec; nb = samples
    # folded into this grid step, R_in = nb*Cin, R_hid = nb*Chid):
    #   x:  (R_in, HW)      w1: (R_hid, R_in)  block-diagonal     b1: (R_hid, 1)
    #   w2: (R_hid, 16)     tap lane index = kh*3 + kw            b2: (R_hid, 1)
    #   w3: (R_in, R_hid)   block-diagonal                        b3: (R_in, 1)
    #   out: (R_in, HW)
    HW = x_ref.shape[-1]
    H, W = height, width

    # ---- conv1: 1x1 pointwise for all nb samples == one block-diagonal MXU
    # matmul (R_hid, R_in) @ (R_in, HW), + bias, ReLU6 (f32 accumulation). ----
    y1 = jnp.dot(w1_ref[...], x_ref[...], preferred_element_type=jnp.float32)
    y1 = jnp.clip(y1 + b1_ref[...], 0.0, 6.0).astype(compute_dtype)

    # ---- depthwise 3x3, pad=1, stride=1, ReLU6.
    # Each row is one (sample, channel); the lane axis is that sample's full
    # flattened H*W, so lane rolls never mix samples.  Each tap = lane roll
    # (XLU) * per-row weight * hoisted float edge-mask multiplier (VPU). ----
    pos = lax.broadcasted_iota(jnp.int32, (1, HW), 1)
    row = pos // W
    col = pos % W
    ones = jnp.ones((1, HW), compute_dtype)
    row_ok = {-1: (row >= 1).astype(compute_dtype), 0: ones,
              1: (row <= H - 2).astype(compute_dtype)}
    col_ok = {-1: (col >= 1).astype(compute_dtype), 0: ones,
              1: (col <= W - 2).astype(compute_dtype)}

    w2 = w2_ref[...]                                 # (R_hid, 16), taps on lanes
    contribs = []
    for kh in range(3):
        for kw in range(3):
            dh, dw = kh - 1, kw - 1
            k = kh * 3 + kw
            wk = w2[:, k:k + 1]                      # (R_hid, 1), per-row weight
            if dh == 0 and dw == 0:
                contribs.append(y1 * wk)             # centre tap: no roll, no mask
                continue
            s = dh * W + dw                          # want tap[p] = y1[p + s]
            shift = (-s if roll_is_jnp else s) % HW
            tap = pltpu.roll(y1, shift, axis=1)
            if dh == 0:
                mask = col_ok[dw]
            elif dw == 0:
                mask = row_ok[dh]
            else:
                mask = row_ok[dh] * col_ok[dw]
            contribs.append(tap * wk * mask)

    # Pairwise (tree) accumulation of the 9 contributions: shorter dependent-add
    # chain so the 4 VALUs are not latency-serialized.
    while len(contribs) > 1:
        nxt = [contribs[i] + contribs[i + 1]
               for i in range(0, len(contribs) - 1, 2)]
        if len(contribs) % 2:
            nxt.append(contribs[-1])
        contribs = nxt
    y2 = jnp.clip(contribs[0] + b2_ref[...], 0.0, 6.0)

    # ---- conv3: block-diagonal 1x1 back to Cin (+ bias), block-level ReLU6. ----
    y3 = jnp.dot(w3_ref[...], y2.astype(w3_ref.dtype),
                 preferred_element_type=jnp.float32) + b3_ref[...]
    o_ref[...] = jnp.clip(y3, 0.0, 6.0).astype(o_ref.dtype)


def _block_diag(w, nb):
    """(O, I) -> (nb*O, nb*I) block-diagonal (one block per folded sample)."""
    if nb == 1:
        return w
    o, i = w.shape
    eye = jnp.eye(nb, dtype=w.dtype)
    return (eye[:, None, :, None] * w[None, :, None, :]).reshape(nb * o, nb * i)


def _choose_samples_per_step(n, requested):
    if requested is None:
        # Amortize the ~0.35us/step pipeline overhead over several samples, keep
        # >= 2 grid steps so both v7x TensorCores get work, and cap nb because
        # block-diagonal weight bytes grow as nb^2.
        requested = min(8, max(1, n // 2))
    nb = int(max(1, min(requested, n)))
    while n % nb:          # must evenly divide the batch
        nb -= 1
    return nb


def conv_inverted_block2d(x_nchw, w1_oihw, b1, w2_oihw, b2, w3_oihw, b3, *,
                          samples_per_step=None,
                          matmul_dtype=jnp.float32,
                          compute_dtype=jnp.float32,
                          out_dtype=None):
    """Inverted-block forward.

    Args:
      x_nchw:  (N, Cin, H, W) input.
      w1_oihw: (Chid, Cin, 1, 1), b1: (Chid,)   expand 1x1 conv.
      w2_oihw: (Chid, 1, 3, 3),   b2: (Chid,)   depthwise 3x3 conv.
      w3_oihw: (Cin, Chid, 1, 1), b3: (Cin,)    project 1x1 conv.
      samples_per_step: images folded into one grid step (None -> auto).
      matmul_dtype: operand dtype of the two 1x1-conv MXU matmuls (bf16 on
        v6e/v7x; accumulation is always f32).
      compute_dtype: dtype of the depthwise / elementwise path.  Keep f32 on
        v5e (no bf16 VPU there); bf16 halves VPU/XLU vreg traffic on v6e/v7x.
      out_dtype: output dtype (None -> x dtype).  bf16 output cuts ~1/3 of the
        HBM traffic when the consumer accepts it.

    # TODO(synk): stride>1, kernel_size!=3, channel_shuffle=True and
    # norm_layer!=None module configurations are not implemented (defaults
    # are what the reference forward exercises).
    """
    N, C, H, W = x_nchw.shape
    Chid = w1_oihw.shape[0]
    HW = H * W
    out_dtype = x_nchw.dtype if out_dtype is None else out_dtype

    nb = _choose_samples_per_step(N, samples_per_step)
    G = N // nb

    # Layout plumbing stays in XLA and is free: NCHW -> (G, nb*C, H*W) is a pure
    # row-major merge.  Samples stack on sublanes; the flattened spatial axis
    # (a multiple of 128 lanes here) stays lane-dense for loads and stores.
    x_blk = x_nchw.reshape(G, nb * C, HW).astype(matmul_dtype)

    # Parameters: 1x1 weights become block-diagonal matrices (one block per
    # folded sample); biases / depthwise taps are tiled along rows.  w2 is
    # repacked with its 9 taps on lanes (padded to 16): one VMEM tile, one DMA.
    w1 = w1_oihw.reshape(Chid, C)
    w3 = w3_oihw.reshape(C, Chid)
    w2 = jnp.pad(w2_oihw.reshape(Chid, 9), ((0, 0), (0, 7)))
    w1_bd = _block_diag(w1, nb).astype(matmul_dtype)       # (nb*Chid, nb*C)
    w3_bd = _block_diag(w3, nb).astype(matmul_dtype)       # (nb*C, nb*Chid)
    w2_t = jnp.tile(w2, (nb, 1)).astype(compute_dtype)     # (nb*Chid, 16)
    b1_t = jnp.tile(b1.reshape(Chid, 1), (nb, 1)).astype(jnp.float32)
    b2_t = jnp.tile(b2.reshape(Chid, 1), (nb, 1)).astype(compute_dtype)
    b3_t = jnp.tile(b3.reshape(C, 1), (nb, 1)).astype(jnp.float32)

    # Advisory cost estimate and a VMEM limit derived from the actual working
    # set (the BlockSpec pipeline double-buffers the in/out blocks).
    mm_b = jnp.dtype(matmul_dtype).itemsize
    cp_b = jnp.dtype(compute_dtype).itemsize
    out_b = jnp.dtype(out_dtype).itemsize
    blk_in = nb * C * HW * mm_b
    blk_out = nb * C * HW * out_b
    w_bytes = int(sum(a.size * a.dtype.itemsize
                      for a in (w1_bd, b1_t, w2_t, b2_t, w3_bd, b3_t)))
    interm = nb * Chid * HW * (4 + 12 * cp_b)   # y1 (f32) + live tap temporaries
    vmem_limit = int(min(64 * 1024 * 1024,
                         max(4 * 1024 * 1024,
                             2 * (blk_in + blk_out + w_bytes) + interm + (1 << 20))))
    flops = int(G * (2 * 2 * (nb * Chid) * (nb * C) * HW + 2 * 9 * nb * Chid * HW))
    bytes_accessed = int(x_blk.size * mm_b + N * C * HW * out_b + w_bytes)

    kernel = functools.partial(
        _inverted_block_kernel, height=H, width=W,
        roll_is_jnp=_roll_is_jnp_convention(), compute_dtype=compute_dtype)

    out_blk = pl.pallas_call(
        kernel,
        out_shape=jax.ShapeDtypeStruct((G, nb * C, HW), out_dtype),
        grid=(G,),
        in_specs=[
            pl.BlockSpec((None, nb * C, HW), lambda g: (g, 0, 0)),  # x (group squeezed)
            pl.BlockSpec(w1_bd.shape, lambda g: (0, 0)),            # w1 block-diag
            pl.BlockSpec(b1_t.shape, lambda g: (0, 0)),             # b1
            pl.BlockSpec(w2_t.shape, lambda g: (0, 0)),             # w2 taps
            pl.BlockSpec(b2_t.shape, lambda g: (0, 0)),             # b2
            pl.BlockSpec(w3_bd.shape, lambda g: (0, 0)),            # w3 block-diag
            pl.BlockSpec(b3_t.shape, lambda g: (0, 0)),             # b3
        ],
        out_specs=pl.BlockSpec((None, nb * C, HW), lambda g: (g, 0, 0)),
        compiler_params=pltpu.CompilerParams(
            dimension_semantics=("parallel",),
            vmem_limit_bytes=vmem_limit),
        cost_estimate=pl.CostEstimate(flops=flops, transcendentals=0,
                                      bytes_accessed=bytes_accessed),
    )(x_blk, w1_bd, b1_t, w2_t, b2_t, w3_bd, b3_t)

    return out_blk.reshape(N, C, H, W)


def _ref_forward(x, w1_oihw, b1, w2_oihw, b2, w3_oihw, b3):
    """Pure-JAX NCHW reference matching the PyTorch module."""
    dn = ("NCHW", "OIHW", "NCHW")
    y = lax.conv_general_dilated(x, w1_oihw, (1, 1), [(0, 0), (0, 0)],
                                 dimension_numbers=dn)
    y = jnp.clip(y + b1[None, :, None, None], 0.0, 6.0)
    y = lax.conv_general_dilated(y, w2_oihw, (1, 1), [(1, 1), (1, 1)],
                                 dimension_numbers=dn,
                                 feature_group_count=w2_oihw.shape[0])
    y = jnp.clip(y + b2[None, :, None, None], 0.0, 6.0)
    y = lax.conv_general_dilated(y, w3_oihw, (1, 1), [(0, 0), (0, 0)],
                                 dimension_numbers=dn)
    return jnp.clip(y + b3[None, :, None, None], 0.0, 6.0)


if __name__ == "__main__":
    # Module config: in_channels=4, expansion_ratio=2.0 -> hidden_channels=8,
    # kernel_size=3, stride=1, norm_layer=None (-> conv bias), activation=ReLU6,
    # channel_shuffle=False, grouping=1.
    N, Cin, H, W = 2, 4, 16, 16
    expansion_ratio = 2.0
    Chid = round(Cin * expansion_ratio)

    key = jax.random.PRNGKey(0)
    kx, k1w, k1b, k2w, k2b, k3w, k3b = jax.random.split(key, 7)

    x = jax.random.normal(kx, (N, Cin, H, W), dtype=jnp.float32)
    w1_oihw = 0.3 * jax.random.normal(k1w, (Chid, Cin, 1, 1), dtype=jnp.float32)
    b1 = 0.1 * jax.random.normal(k1b, (Chid,), dtype=jnp.float32)
    w2_oihw = 0.3 * jax.random.normal(k2w, (Chid, 1, 3, 3), dtype=jnp.float32)
    b2 = 0.1 * jax.random.normal(k2b, (Chid,), dtype=jnp.float32)
    w3_oihw = 0.3 * jax.random.normal(k3w, (Cin, Chid, 1, 1), dtype=jnp.float32)
    b3 = 0.1 * jax.random.normal(k3b, (Cin,), dtype=jnp.float32)

    ref = _ref_forward(x, w1_oihw, b1, w2_oihw, b2, w3_oihw, b3)

    # 1) Default path: one sample per step (grid=2, good for v7x's 2 TCs), all f32.
    out = jax.block_until_ready(
        conv_inverted_block2d(x, w1_oihw, b1, w2_oihw, b2, w3_oihw, b3))
    assert out.shape == (N, Cin, H, W) and out.dtype == jnp.float32
    assert jnp.allclose(out, ref, atol=1e-5, rtol=1e-5), (
        f"f32 max abs diff {jnp.max(jnp.abs(out - ref))}")

    # 2) Batch-folded path (2 samples per grid step, block-diag matmuls), under
    #    jax.jit to exercise the trace-safe roll probe.  Still exact.
    fn = jax.jit(functools.partial(conv_inverted_block2d, samples_per_step=2))
    out2 = jax.block_until_ready(fn(x, w1_oihw, b1, w2_oihw, b2, w3_oihw, b3))
    assert jnp.allclose(out2, ref, atol=1e-5, rtol=1e-5), (
        f"folded f32 max abs diff {jnp.max(jnp.abs(out2 - ref))}")

    # 3) bf16 MXU operands + bf16 output (v6e/v7x HBM-traffic path); loose check.
    out3 = jax.block_until_ready(
        conv_inverted_block2d(x, w1_oihw, b1, w2_oihw, b2, w3_oihw, b3,
                              samples_per_step=2,
                              matmul_dtype=jnp.bfloat16,
                              out_dtype=jnp.bfloat16))
    assert out3.dtype == jnp.bfloat16
    assert jnp.allclose(out3.astype(jnp.float32), ref, atol=0.3, rtol=0.05), (
        f"bf16 max abs diff {jnp.max(jnp.abs(out3.astype(jnp.float32) - ref))}")

    print("KERNEL_OK")
</pallas_src>

<mosaic_0001>
module attributes {stable_mosaic.version = 11 : i64} {
  func.func @probe(%arg0: memref<8x128xf32, #tpu.memory_space<vmem>>, %arg1: memref<8x128xf32, #tpu.memory_space<vmem>>) attributes {dimension_semantics = [], scalar_prefetch = 0 : i64, scratch_operands = 0 : i64, tpu.core_type = #tpu.core_type<tc>} {
    %c0 = arith.constant 0 : index
    %c0_0 = arith.constant 0 : index
    %0 = vector.load %arg0[%c0, %c0_0] : memref<8x128xf32, #tpu.memory_space<vmem>>, vector<8x128xf32>
    %c1_i32 = arith.constant 1 : i32
    %1 = tpu.dynamic_rotate %0 by %c1_i32 dim 1 : vector<8x128xf32>, i32 -> vector<8x128xf32>
    %c0_1 = arith.constant 0 : index
    %c0_2 = arith.constant 0 : index
    %2 = vector.load %arg1[%c0_1, %c0_2] : memref<8x128xf32, #tpu.memory_space<vmem>>, vector<8x128xf32>
    tpu.vector_store %arg1[%c0_1, %c0_2], %1 {strides = array<i32>} : memref<8x128xf32, #tpu.memory_space<vmem>>, vector<8x128xf32>,
    return
  }
}

</mosaic_0001>

<llo_original>
// kernel: tpu_custom_call.1
$region0: #{tpu_custom_call.1}
  #allocation0 [shape = 'u32[]', space=smem, size = 0x4, offset = 0x4, fixed_abs, tag = 'smem constant byte address 0x4 - core index']
  #allocation1 [shape = 'u32[144,128]{1,0:T(1,128)}', space=vmem, size = 0x12000, scoped, tag = 'internal scratch']
  %s0 = inlined_call_operand.hbm [shape: f32[8,128], index: 0, kind: input, shape index: {}]
  %s1 = inlined_call_operand.hbm [shape: f32[8,128], index: 1, kind: output, shape index: {}]
  %s2 = sld [smem:[#allocation0]]
  $region18: #{tpu_custom_call.1} parent=0
    _
  %s4 = ssub.s32 1, %s2
  %s5 = scalar_select 0, %s4, %s2
  $region1: #{tpu_custom_call.1} parent=0
    #allocation2 [shape = 'u8[4096]{0}', space=vmem, size = 0x1000, scoped, tag = 'input window, operand 0, single buffered']
    #allocation3 [shape = 's32[1]{0}', space=sflag, size = 0x4, scoped, tag = 'scoped memory for tpu_custom_call.1']
    #allocation4 [shape = 's32[1]{0}', space=sflag, size = 0x4, scoped, tag = 'scoped memory for tpu_custom_call.1']
    #allocation5 [shape = 'u8[4096]{0}', space=vmem, size = 0x1000, scoped, tag = 'output window, operand 0, single buffered']
    %6 = vsyncpa [#allocation3], 0
    %7 = vsyncpa [#allocation4], 0
    // Predicated region
    $region2: #{tpu_custom_call.1} parent=1 // pred_check
      _
    $region3: #{tpu_custom_call.1} parent=1 // pred_check_branch
      %9 = sbr.rel (0) target = $region5
    $region4: #{tpu_custom_call.1} parent=1 // pred_region
      %s11 = ssub.s32 128, 128
      %12 = vsyncadd [#allocation3], %s11
      %s14 = sshll.u32 [#allocation2], 4
      %s15 = int_to_ptr.vmem [resolvable:$true] %s14
      %17 = dma.hbm_to_vmem [thread:$0]  %s0, 128, %s15, [#allocation3]
    $region5: #{tpu_custom_call.1} parent=1 // pred_fallthru
      _
    // Predicated region
    $region6: #{tpu_custom_call.1} parent=1 // pred_check
      _
    $region7: #{tpu_custom_call.1} parent=1 // pred_check_branch
      %19 = sbr.rel (0) target = $region9
    $region8: #{tpu_custom_call.1} parent=1 // pred_region
      %20 = dma.done [#allocation3], 128
    $region9: #{tpu_custom_call.1} parent=1 // pred_fallthru
      _
    %v21 = vld [vmem:[#allocation2] sm:$0xff]
    %22 = vrot.lane.b32.xlu0 %v21, 1
    %v23 = vpop.permute.xlu0 %22
    %24 = vst [vmem:[#allocation5] sm:$0xff] %v23
    // Predicated region
    $region10: #{tpu_custom_call.1} parent=1 // pred_check
      _
    $region11: #{tpu_custom_call.1} parent=1 // pred_check_branch
      %26 = sbr.rel (0) target = $region13
    $region12: #{tpu_custom_call.1} parent=1 // pred_region
      %s28 = ssub.s32 128, 128
      %29 = vsyncadd [#allocation4], %s28
      %s31 = sshll.u32 [#allocation5], 4
      %s32 = int_to_ptr.vmem [resolvable:$true] %s31
      %34 = dma.vmem_to_hbm [thread:$0]  %s32, 128, %s1, [#allocation4]
    $region13: #{tpu_custom_call.1} parent=1 // pred_fallthru
      _
    // Predicated region
    $region14: #{tpu_custom_call.1} parent=1 // pred_check
      _
    $region15: #{tpu_custom_call.1} parent=1 // pred_check_branch
      %36 = sbr.rel (0) target = $region17
    $region16: #{tpu_custom_call.1} parent=1 // pred_region
      %37 = dma.done [#allocation4], 128
    $region17: #{tpu_custom_call.1} parent=1 // pred_fallthru
      _
    %38 = vsyncpa [#allocation3], 1
    %39 = vsyncpa [#allocation4], 1

</llo_original>
